<compile_context>
chip_gen: v7x
topology: tpu7x:2x2x1
jax: 0.10.0
libtpu: 0.0.40
codegen_flags: <defaults>
</compile_context>

<pallas_src>
import functools

import jax
import jax.numpy as jnp
from jax.experimental import pallas as pl
from jax.experimental.pallas import tpu as pltpu

EPS = 1e-5   # nn.BatchNorm2d default
NC = 2       # per-core stat partials / leading "parallel" axis (v7x: 2 TensorCores)


def _round_up(x, m):
    return ((x + m - 1) // m) * m


def _pick_tile_hw(HW, tile_p):
    """Largest multiple of 128 that divides round_up(HW, 128) and is <= tile_p."""
    hw128 = _round_up(HW, 128)
    n128 = hw128 // 128
    cap = max(tile_p // 128, 1)
    best = 1
    for d in range(1, n128 + 1):
        if n128 % d == 0 and d <= cap:
            best = d
    return 128 * best, hw128


# --------------------------------------------------------------------------- #
# Pass 1: conv tile (bf16 MXU matmul, f32 accum) + BN batch statistics.
# conv layout is (Cout, tile_hw): columns on lanes -> lane-dense stores.
# Grid = (core, column-tile); stats are per-core partials, resident across the
# inner ("arbitrary") axis.  Zero-padded columns produce conv == 0 and add
# nothing to the sums (the wrapper divides by the true element count).
# --------------------------------------------------------------------------- #
def _conv_stats_kernel(colsT_ref, w_ref, conv_ref, sum_ref, sq_ref):
    @pl.when(pl.program_id(1) == 0)
    def _init():
        sum_ref[...] = jnp.zeros_like(sum_ref)
        sq_ref[...] = jnp.zeros_like(sq_ref)

    conv = jnp.dot(w_ref[...], colsT_ref[...],
                   preferred_element_type=jnp.float32)          # (Cout, tile_hw) f32
    conv_ref[...] = conv.astype(conv_ref.dtype)                 # bf16 intermediate
    sum_ref[...] += jnp.sum(conv, axis=1, keepdims=True)[None, :, :]
    sq_ref[...] += jnp.sum(conv * conv, axis=1, keepdims=True)[None, :, :]


# --------------------------------------------------------------------------- #
# Pass 2: normalize (folded scale/shift) + ReLU, writing (N, Cout, HW) directly.
# scale/shift are (Cout, 1) f32, resident across the whole grid.
# --------------------------------------------------------------------------- #
def _bn_relu_kernel(conv_ref, scale_ref, shift_ref, o_ref):
    y = conv_ref[...].astype(jnp.float32) * scale_ref[...] + shift_ref[...]
    o_ref[...] = jnp.maximum(y, jnp.float32(0.0))[None, :, :]


@functools.partial(jax.jit, static_argnames=("tile_p",))
def pre_backbone_forward(x_nchw, weight_oihw, gamma, beta, *, tile_p=8192):
    """x_nchw: (N, Cin, H, W); weight_oihw: (Cout, Cin, KH, KW); returns (N, Cout, H, W)."""
    N, Cin, H, W = x_nchw.shape
    Cout, _, KH, KW = weight_oihw.shape
    pad = KH // 2                      # 7x7, stride 1, pad 3 -> same spatial size

    HW = H * W
    K = KH * KW * Cin
    K_pad = _round_up(K, 16)           # bf16 sublane packing only (not 128)

    tile_hw, HW_pad = _pick_tile_hw(HW, max(tile_p, 128))
    T_hw = HW_pad // tile_hw           # column tiles per image
    T_total = N * T_hw
    T_half = -(-T_total // NC)         # ceil: tiles per core slice
    P_total = NC * T_half * tile_hw    # >= N*HW_pad; extra tiles are all-zero

    x32 = x_nchw.astype(jnp.float32)
    w32 = weight_oihw.astype(jnp.float32)

    # ---- im2col (transposed), per-image column layout:
    #      colsT[k, n*HW_pad + h*W + w] = xp[n, ci, h+kh, w+kw],
    #      k = (kh*KW + kw)*Cin + ci.  bf16 for the MXU. -------------------- #
    xp = jnp.pad(x32, ((0, 0), (0, 0), (pad, pad), (pad, pad)))
    patches = [xp[:, :, kh:kh + H, kw:kw + W]
               for kh in range(KH) for kw in range(KW)]          # each (N, Cin, H, W)
    colsT = jnp.stack(patches, axis=0)                           # (KH*KW, N, Cin, H, W)
    colsT = jnp.transpose(colsT, (0, 2, 1, 3, 4))                # (KH*KW, Cin, N, H, W)
    colsT = colsT.reshape(K, N, HW)
    colsT = jnp.pad(colsT, ((0, K_pad - K), (0, 0), (0, HW_pad - HW)))
    colsT = colsT.reshape(K_pad, N * HW_pad)
    colsT = jnp.pad(colsT, ((0, 0), (0, P_total - N * HW_pad))).astype(jnp.bfloat16)

    # weights OIHW -> (Cout, KH, KW, Cin) -> (Cout, K), zero-pad K, bf16.
    w_mat = jnp.transpose(w32, (0, 2, 3, 1)).reshape(Cout, K)
    w_mat = jnp.pad(w_mat, ((0, 0), (0, K_pad - K))).astype(jnp.bfloat16)

    vmem_limit = 32 * 1024 * 1024      # explicit; ~10 MiB/step at tile_hw=8192, safe on v7x
    cols_bytes = K_pad * P_total * 2
    conv_bytes = Cout * P_total * 2    # bf16 intermediate

    # ---- Pass 1: conv + batch statistics (2-core "parallel" x "arbitrary") -- #
    conv, s_sum, s_sq = pl.pallas_call(
        _conv_stats_kernel,
        grid=(NC, T_half),
        in_specs=[
            pl.BlockSpec((K_pad, tile_hw), lambda c, j: (0, c * T_half + j)),  # im2col tile
            pl.BlockSpec((Cout, K_pad), lambda c, j: (0, 0)),                  # weights (resident)
        ],
        out_specs=(
            pl.BlockSpec((Cout, tile_hw), lambda c, j: (0, c * T_half + j)),   # conv tile (bf16)
            pl.BlockSpec((1, Cout, 1), lambda c, j: (c, 0, 0)),                # per-core sum
            pl.BlockSpec((1, Cout, 1), lambda c, j: (c, 0, 0)),                # per-core sumsq
        ),
        out_shape=(
            jax.ShapeDtypeStruct((Cout, P_total), jnp.bfloat16),
            jax.ShapeDtypeStruct((NC, Cout, 1), jnp.float32),
            jax.ShapeDtypeStruct((NC, Cout, 1), jnp.float32),
        ),
        compiler_params=pltpu.CompilerParams(
            dimension_semantics=("parallel", "arbitrary"),
            vmem_limit_bytes=vmem_limit),
        cost_estimate=pl.CostEstimate(
            flops=2 * Cout * K_pad * P_total + 4 * Cout * P_total,
            transcendentals=0,
            bytes_accessed=cols_bytes + Cout * K_pad * 2 + conv_bytes + 8 * NC * Cout),
    )(colsT, w_mat)

    # ---- glue: combine per-core partials, fold BN (biased/train-mode var) ---- #
    # NOTE: E[x^2]-mean^2 is cancellation-prone when |mean| >> std; acceptable
    # for typical activations (see review), revisit with shifted sums if needed.
    cnt = jnp.float32(N * HW)
    tot_sum = jnp.sum(s_sum, axis=0)                           # (Cout, 1)
    tot_sq = jnp.sum(s_sq, axis=0)                             # (Cout, 1)
    mean = tot_sum / cnt
    var = jnp.maximum(tot_sq / cnt - mean * mean, 0.0)         # biased, like torch BN
    inv_std = jax.lax.rsqrt(var + EPS)
    scale = gamma.astype(jnp.float32).reshape(Cout, 1) * inv_std
    shift = beta.astype(jnp.float32).reshape(Cout, 1) - mean * scale

    # ---- Pass 2: normalize + ReLU, output written as (N, Cout, HW_pad) ------ #
    out3 = pl.pallas_call(
        _bn_relu_kernel,
        grid=(N, T_hw),
        in_specs=[
            pl.BlockSpec((Cout, tile_hw), lambda n, j: (0, n * T_hw + j)),
            pl.BlockSpec((Cout, 1), lambda n, j: (0, 0)),
            pl.BlockSpec((Cout, 1), lambda n, j: (0, 0)),
        ],
        out_specs=pl.BlockSpec((1, Cout, tile_hw), lambda n, j: (n, 0, j)),
        out_shape=jax.ShapeDtypeStruct((N, Cout, HW_pad), jnp.float32),
        compiler_params=pltpu.CompilerParams(
            dimension_semantics=("parallel", "parallel"),
            vmem_limit_bytes=vmem_limit),
        cost_estimate=pl.CostEstimate(
            flops=3 * Cout * N * HW_pad,
            transcendentals=0,
            bytes_accessed=Cout * N * HW_pad * 2 + N * Cout * HW_pad * 4 + 16 * Cout),
    )(conv, scale, shift)

    if HW_pad == HW:                           # free metadata reshape (test, 224^2, ...)
        return out3.reshape(N, Cout, H, W)
    # Only when H*W is not a multiple of 128: one trailing slice-copy (still
    # cheaper than the old full transpose).
    return out3[:, :, :HW].reshape(N, Cout, H, W)


def reference_forward(x_nchw, weight_oihw, gamma, beta):
    """Plain-JAX reference mirroring the PyTorch forward (training-mode BN)."""
    conv = jax.lax.conv_general_dilated(
        x_nchw.astype(jnp.float32), weight_oihw.astype(jnp.float32),
        window_strides=(1, 1), padding=((3, 3), (3, 3)),
        dimension_numbers=("NCHW", "OIHW", "NCHW"))
    mean = jnp.mean(conv, axis=(0, 2, 3), keepdims=True)
    var = jnp.var(conv, axis=(0, 2, 3), keepdims=True)         # biased, like torch BN
    y = (conv - mean) * jax.lax.rsqrt(var + EPS)
    y = y * gamma.reshape(1, -1, 1, 1) + beta.reshape(1, -1, 1, 1)
    return jnp.maximum(y, 0.0)


if __name__ == "__main__":
    # Small shapes consistent with the module: batch=2, in_channels=4,
    # out_channels=8, spatial 16x16.
    N, Cin, Cout, H, W = 2, 4, 8, 16, 16
    KH = KW = 7

    key = jax.random.PRNGKey(0)
    kx, kwt, kg, kb = jax.random.split(key, 4)
    x = jax.random.normal(kx, (N, Cin, H, W), dtype=jnp.float32)
    conv_weight = 0.1 * jax.random.normal(kwt, (Cout, Cin, KH, KW), dtype=jnp.float32)
    # learnable BN affine params (non-default values to exercise the affine path)
    gamma = 1.0 + 0.1 * jax.random.normal(kg, (Cout,), dtype=jnp.float32)
    beta = 0.05 * jax.random.normal(kb, (Cout,), dtype=jnp.float32)

    # tile_p=128 -> 2 column tiles per image, 2 per core slice: exercises the
    # pipelined stat accumulation and the 2-way core split.  Default (8192) is
    # the production tile size.
    out = pre_backbone_forward(x, conv_weight, gamma, beta, tile_p=128)
    out = jax.block_until_ready(out)
    assert out.shape == (N, Cout, H, W), out.shape

    # Check against a reference with the same bf16-quantized MXU inputs
    # (f32 accumulation); tolerance covers the bf16 conv-intermediate store.
    x_q = x.astype(jnp.bfloat16).astype(jnp.float32)
    w_q = conv_weight.astype(jnp.bfloat16).astype(jnp.float32)
    ref_q = jax.block_until_ready(reference_forward(x_q, w_q, gamma, beta))
    assert jnp.allclose(out, ref_q, atol=2e-2, rtol=2e-2), \
        float(jnp.max(jnp.abs(out - ref_q)))

    # Looser sanity check against the pure-f32 PyTorch-equivalent forward
    # (slack covers bf16 quantization of MXU operands + bf16 conv intermediate).
    ref = jax.block_until_ready(reference_forward(x, conv_weight, gamma, beta))
    assert jnp.allclose(out, ref, atol=5e-2, rtol=5e-2), \
        float(jnp.max(jnp.abs(out - ref)))

    print("KERNEL_OK")
</pallas_src>

<mosaic_0001>
module attributes {stable_mosaic.version = 11 : i64} {
  func.func @_conv_stats_kernel(%arg0: i32, %arg1: i32, %arg2: memref<208x128xbf16, #tpu.memory_space<vmem>>, %arg3: memref<8x208xbf16, #tpu.memory_space<vmem>>, %arg4: memref<8x128xbf16, #tpu.memory_space<vmem>>, %arg5: memref<1x8x1xf32, #tpu.memory_space<vmem>>, %arg6: memref<1x8x1xf32, #tpu.memory_space<vmem>>) attributes {dimension_semantics = [#tpu.dimension_semantics<parallel>, #tpu.dimension_semantics<arbitrary>], iteration_bounds = array<i64: 2, 2>, scalar_prefetch = 0 : i64, scratch_operands = 0 : i64, tpu.core_type = #tpu.core_type<tc>, window_params = [{transform_indices = @transform_0, window_bounds = array<i64: 208, 128>}, {pipeline_mode = #tpu.pipeline_mode<synchronous>, transform_indices = @transform_1, window_bounds = array<i64: 8, 208>}, {transform_indices = @transform_2, window_bounds = array<i64: 8, 128>}, {transform_indices = @transform_3, window_bounds = array<i64: 1, 8, 1>}, {transform_indices = @transform_4, window_bounds = array<i64: 1, 8, 1>}]} {
    %c0_i32 = arith.constant 0 : i32
    %0 = arith.cmpi eq, %arg1, %c0_i32 : i32
    %1 = arith.extui %0 : i1 to i32
    %c0_i32_0 = arith.constant 0 : i32
    %2 = arith.cmpi ne, %1, %c0_i32_0 : i32
    scf.if %2 {
      %cst_20 = arith.constant 0.000000e+00 : f32
      %21 = vector.broadcast %cst_20 : f32 to vector<1x8x1xf32>
      %c0_21 = arith.constant 0 : index
      %c0_22 = arith.constant 0 : index
      %c0_23 = arith.constant 0 : index
      %22 = vector.load %arg5[%c0_21, %c0_22, %c0_23] : memref<1x8x1xf32, #tpu.memory_space<vmem>>, vector<1x8x1xf32>
      tpu.vector_store %arg5[%c0_21, %c0_22, %c0_23], %21 {strides = array<i32>} : memref<1x8x1xf32, #tpu.memory_space<vmem>>, vector<1x8x1xf32>,
      %cst_24 = arith.constant 0.000000e+00 : f32
      %23 = vector.broadcast %cst_24 : f32 to vector<1x8x1xf32>
      %c0_25 = arith.constant 0 : index
      %c0_26 = arith.constant 0 : index
      %c0_27 = arith.constant 0 : index
      %24 = vector.load %arg6[%c0_25, %c0_26, %c0_27] : memref<1x8x1xf32, #tpu.memory_space<vmem>>, vector<1x8x1xf32>
      tpu.vector_store %arg6[%c0_25, %c0_26, %c0_27], %23 {strides = array<i32>} : memref<1x8x1xf32, #tpu.memory_space<vmem>>, vector<1x8x1xf32>,
    } else {
    }
    %c0 = arith.constant 0 : index
    %c0_1 = arith.constant 0 : index
    %3 = vector.load %arg3[%c0, %c0_1] : memref<8x208xbf16, #tpu.memory_space<vmem>>, vector<8x208xbf16>
    %c0_2 = arith.constant 0 : index
    %c0_3 = arith.constant 0 : index
    %4 = vector.load %arg2[%c0_2, %c0_3] : memref<208x128xbf16, #tpu.memory_space<vmem>>, vector<208x128xbf16>
    %cst = arith.constant dense<0.000000e+00> : vector<8x128xf32>
    %5 = tpu.matmul %3, %4, %cst {dimension_numbers = #tpu.dot_dimension_numbers<[1], [0], [0], [1], [0, 0, 1, 1], [], []>} : vector<8x208xbf16>, vector<208x128xbf16>, vector<8x128xf32> -> vector<8x128xf32>
    %6 = arith.truncf %5 : vector<8x128xf32> to vector<8x128xbf16>
    %c0_4 = arith.constant 0 : index
    %c0_5 = arith.constant 0 : index
    %7 = vector.load %arg4[%c0_4, %c0_5] : memref<8x128xbf16, #tpu.memory_space<vmem>>, vector<8x128xbf16>
    tpu.vector_store %arg4[%c0_4, %c0_5], %6 {strides = array<i32>} : memref<8x128xbf16, #tpu.memory_space<vmem>>, vector<8x128xbf16>,
    %c0_6 = arith.constant 0 : index
    %c0_7 = arith.constant 0 : index
    %c0_8 = arith.constant 0 : index
    %8 = vector.load %arg5[%c0_6, %c0_7, %c0_8] : memref<1x8x1xf32, #tpu.memory_space<vmem>>, vector<1x8x1xf32>
    %cst_9 = arith.constant dense<0.000000e+00> : vector<8xf32>
    %9 = vector.multi_reduction <add>, %5, %cst_9 [1] : vector<8x128xf32> to vector<8xf32>
    %10 = vector.shape_cast %9 : vector<8xf32> to vector<8x1xf32>
    %11 = vector.shape_cast %10 : vector<8x1xf32> to vector<1x8x1xf32>
    %12 = arith.addf %8, %11 : vector<1x8x1xf32>
    %c0_10 = arith.constant 0 : index
    %c0_11 = arith.constant 0 : index
    %c0_12 = arith.constant 0 : index
    %13 = vector.load %arg5[%c0_10, %c0_11, %c0_12] : memref<1x8x1xf32, #tpu.memory_space<vmem>>, vector<1x8x1xf32>
    tpu.vector_store %arg5[%c0_10, %c0_11, %c0_12], %12 {strides = array<i32>} : memref<1x8x1xf32, #tpu.memory_space<vmem>>, vector<1x8x1xf32>,
    %c0_13 = arith.constant 0 : index
    %c0_14 = arith.constant 0 : index
    %c0_15 = arith.constant 0 : index
    %14 = vector.load %arg6[%c0_13, %c0_14, %c0_15] : memref<1x8x1xf32, #tpu.memory_space<vmem>>, vector<1x8x1xf32>
    %15 = arith.mulf %5, %5 : vector<8x128xf32>
    %cst_16 = arith.constant dense<0.000000e+00> : vector<8xf32>
    %16 = vector.multi_reduction <add>, %15, %cst_16 [1] : vector<8x128xf32> to vector<8xf32>
    %17 = vector.shape_cast %16 : vector<8xf32> to vector<8x1xf32>
    %18 = vector.shape_cast %17 : vector<8x1xf32> to vector<1x8x1xf32>
    %19 = arith.addf %14, %18 : vector<1x8x1xf32>
    %c0_17 = arith.constant 0 : index
    %c0_18 = arith.constant 0 : index
    %c0_19 = arith.constant 0 : index
    %20 = vector.load %arg6[%c0_17, %c0_18, %c0_19] : memref<1x8x1xf32, #tpu.memory_space<vmem>>, vector<1x8x1xf32>
    tpu.vector_store %arg6[%c0_17, %c0_18, %c0_19], %19 {strides = array<i32>} : memref<1x8x1xf32, #tpu.memory_space<vmem>>, vector<1x8x1xf32>,
    return
  }
  func.func @transform_0(%arg0: i32, %arg1: i32) -> (i32, i32) {
    %c2_i32 = arith.constant 2 : i32
    %0 = arith.muli %arg0, %c2_i32 : i32
    %1 = arith.addi %0, %arg1 : i32
    %c0_i32 = arith.constant 0 : i32
    %c0_i32_0 = arith.constant 0 : i32
    return %c0_i32, %1 : i32, i32
  }
  func.func @transform_1(%arg0: i32, %arg1: i32) -> (i32, i32) {
    %c0_i32 = arith.constant 0 : i32
    %c0_i32_0 = arith.constant 0 : i32
    %c0_i32_1 = arith.constant 0 : i32
    return %c0_i32, %c0_i32_0 : i32, i32
  }
  func.func @transform_2(%arg0: i32, %arg1: i32) -> (i32, i32) {
    %c2_i32 = arith.constant 2 : i32
    %0 = arith.muli %arg0, %c2_i32 : i32
    %1 = arith.addi %0, %arg1 : i32
    %c0_i32 = arith.constant 0 : i32
    %c0_i32_0 = arith.constant 0 : i32
    return %c0_i32, %1 : i32, i32
  }
  func.func @transform_3(%arg0: i32, %arg1: i32) -> (i32, i32, i32) {
    %c0_i32 = arith.constant 0 : i32
    %c0_i32_0 = arith.constant 0 : i32
    %c0_i32_1 = arith.constant 0 : i32
    return %arg0, %c0_i32, %c0_i32_0 : i32, i32, i32
  }
  func.func @transform_4(%arg0: i32, %arg1: i32) -> (i32, i32, i32) {
    %c0_i32 = arith.constant 0 : i32
    %c0_i32_0 = arith.constant 0 : i32
    %c0_i32_1 = arith.constant 0 : i32
    return %arg0, %c0_i32, %c0_i32_0 : i32, i32, i32
  }
}

module attributes {stable_mosaic.version = 11 : i64} {
  func.func @_bn_relu_kernel(%arg0: i32, %arg1: i32, %arg2: memref<8x128xbf16, #tpu.memory_space<vmem>>, %arg3: memref<8x1xf32, #tpu.memory_space<vmem>>, %arg4: memref<8x1xf32, #tpu.memory_space<vmem>>, %arg5: memref<1x8x128xf32, #tpu.memory_space<vmem>>) attributes {dimension_semantics = [#tpu.dimension_semantics<parallel>, #tpu.dimension_semantics<parallel>], iteration_bounds = array<i64: 2, 2>, scalar_prefetch = 0 : i64, scratch_operands = 0 : i64, tpu.core_type = #tpu.core_type<tc>, window_params = [{transform_indices = @transform_0, window_bounds = array<i64: 8, 128>}, {pipeline_mode = #tpu.pipeline_mode<synchronous>, transform_indices = @transform_1, window_bounds = array<i64: 8, 1>}, {pipeline_mode = #tpu.pipeline_mode<synchronous>, transform_indices = @transform_2, window_bounds = array<i64: 8, 1>}, {transform_indices = @transform_3, window_bounds = array<i64: 1, 8, 128>}]} {
    %c0 = arith.constant 0 : index
    %c0_0 = arith.constant 0 : index
    %0 = vector.load %arg2[%c0, %c0_0] : memref<8x128xbf16, #tpu.memory_space<vmem>>, vector<8x128xbf16>
    %1 = arith.extf %0 : vector<8x128xbf16> to vector<8x128xf32>
    %c0_1 = arith.constant 0 : index
    %c0_2 = arith.constant 0 : index
    %2 = vector.load %arg3[%c0_1, %c0_2] : memref<8x1xf32, #tpu.memory_space<vmem>>, vector<8x1xf32>
    %3 = vector.broadcast %2 : vector<8x1xf32> to vector<8x128xf32>
    %4 = arith.mulf %1, %3 : vector<8x128xf32>
    %c0_3 = arith.constant 0 : index
    %c0_4 = arith.constant 0 : index
    %5 = vector.load %arg4[%c0_3, %c0_4] : memref<8x1xf32, #tpu.memory_space<vmem>>, vector<8x1xf32>
    %6 = vector.broadcast %5 : vector<8x1xf32> to vector<8x128xf32>
    %7 = arith.addf %4, %6 : vector<8x128xf32>
    %cst = arith.constant 0.000000e+00 : f32
    %8 = vector.broadcast %cst : f32 to vector<8x128xf32>
    %9 = arith.maximumf %7, %8 : vector<8x128xf32>
    %10 = vector.shape_cast %9 : vector<8x128xf32> to vector<1x8x128xf32>
    %c0_5 = arith.constant 0 : index
    %c0_6 = arith.constant 0 : index
    %c0_7 = arith.constant 0 : index
    %11 = vector.load %arg5[%c0_5, %c0_6, %c0_7] : memref<1x8x128xf32, #tpu.memory_space<vmem>>, vector<1x8x128xf32>
    tpu.vector_store %arg5[%c0_5, %c0_6, %c0_7], %10 {strides = array<i32>} : memref<1x8x128xf32, #tpu.memory_space<vmem>>, vector<1x8x128xf32>,
    return
  }
  func.func @transform_0(%arg0: i32, %arg1: i32) -> (i32, i32) {
    %c2_i32 = arith.constant 2 : i32
    %0 = arith.muli %arg0, %c2_i32 : i32
    %1 = arith.addi %0, %arg1 : i32
    %c0_i32 = arith.constant 0 : i32
    %c0_i32_0 = arith.constant 0 : i32
    return %c0_i32, %1 : i32, i32
  }
  func.func @transform_1(%arg0: i32, %arg1: i32) -> (i32, i32) {
    %c0_i32 = arith.constant 0 : i32
    %c0_i32_0 = arith.constant 0 : i32
    %c0_i32_1 = arith.constant 0 : i32
    return %c0_i32, %c0_i32_0 : i32, i32
  }
  func.func @transform_2(%arg0: i32, %arg1: i32) -> (i32, i32) {
    %c0_i32 = arith.constant 0 : i32
    %c0_i32_0 = arith.constant 0 : i32
    %c0_i32_1 = arith.constant 0 : i32
    return %c0_i32, %c0_i32_0 : i32, i32
  }
  func.func @transform_3(%arg0: i32, %arg1: i32) -> (i32, i32, i32) {
    %c0_i32 = arith.constant 0 : i32
    %c0_i32_0 = arith.constant 0 : i32
    return %arg0, %c0_i32, %arg1 : i32, i32, i32
  }
}

</mosaic_0001>

<llo_original>
// kernel: pre_backbone_forward.3
$region0: #{pre_backbone_forward.3}
  #allocation0 [shape = 'u32[]', space=smem, size = 0x4, offset = 0x4, fixed_abs, tag = 'smem constant byte address 0x4 - core index']
  #allocation1 [shape = 'u32[144,128]{1,0:T(1,128)}', space=vmem, size = 0x12000, scoped, tag = 'internal scratch']
  %s0 = inlined_call_operand.vmem [shape: bf16[8,512], index: 0, kind: input, shape index: {}]
  %s1 = inlined_call_operand.vmem [shape: f32[8,1], index: 1, kind: input, shape index: {}]
  %s2 = inlined_call_operand.vmem [shape: f32[8,1], index: 2, kind: input, shape index: {}]
  %s3 = inlined_call_operand.vmem [shape: f32[2,8,256], index: 3, kind: output, shape index: {}]
  %s4 = sld [smem:[#allocation0]]
  $region45: #{pre_backbone_forward.3} parent=0
    _
  %s6 = ssub.s32 1, %s4
  %s7 = scalar_select 0, %s6, %s4
  loop: start=0, step=1, limit=6
  $region2: #{pre_backbone_forward.3} parent=0 // loop_pre_header
    _
  $region3: #{pre_backbone_forward.3} parent=0 // loop_header
    %s9 = sphi 0, %s13
    %p10 = scmp.ge.s32.totalorder %s9, 6
    %s16 = sphi 0, %s28
    %s17 = sphi 0, %s24
    %s18 = sphi 0, %s16
    %s19 = sphi 0, %s17
    %s20 = sphi 0, %s18
    %s21 = sphi 0, %s19
    %s35 = sphi 0, %s37
    %s38 = sphi 0, %s35
    %s39 = sphi 0, %s38
    %s55 = sphi 0, %s39
    %s59 = sphi 0, %s59
    %s61 = sphi 0, %s59
    %s62 = sphi 0, %s61
    %s76 = sphi 0, %s62
    %s80 = sphi 0, %s80
    %s82 = sphi 0, %s80
    %s83 = sphi 0, %s82
    %s97 = sphi 0, %s83
    %s105 = sphi 0, %s107
    %s108 = sphi 0, %s105
    %s109 = sphi 0, %s108
    %s125 = sphi 0, %s109
  $region4: #{pre_backbone_forward.3} parent=0 // loop_header_branch
    %12 = sbr.rel (%p10) target = $region8
  $region5: #{pre_backbone_forward.3} parent=0 // loop_body
    %s14 = ssub.s32 %s9, 1
    %s15 = ssub.s32 %s9, 2
    %s22 = sadd.s32 1, %s17
    %p23 = scmp.ge.s32.totalorder %s22, 2
    %s24 = scalar_select %p23, 0, %s22
    %s25 = sadd.s32 1, %s16
    %s26 = scalar_select %p23, %s25, %s16
    %p27 = scmp.ge.s32.totalorder %s26, 2
    %s28 = scalar_select %p27, 0, %s26
    %s29 = smul.u32 %s16, 2
    %s30 = sadd.s32 %s29, %s17
    %s31 = smul.u32 %s28, 2
    %s32 = sadd.s32 %s31, %s24
    %s33 = ssub.s32 %s30, %s32
    %p34 = scmp.eq.s32.totalorder %s33, 0
    %s36 = sadd.s32 %s35, 1
    %s37 = scalar_select %p34, %s35, %s36
    %p40 = pneg %p34
    %p41 = scmp.eq.s32.totalorder %s9, 3
    %p42 = por %p40, %p41
    %p43 = scmp.ne.s32.totalorder %s35, %s38
    %p44 = scmp.eq.s32.totalorder %s9, 0
    %p45 = por %p43, %p44
    %p46 = scmp.ne.s32.totalorder %s35, %s38
    %p47 = scmp.eq.s32.totalorder %s14, 3
    %p48 = por %p46, %p47
    %p49 = scmp.ne.s32.totalorder %s38, %s39
    %p50 = scmp.eq.s32.totalorder %s14, 0
    %p51 = por %p49, %p50
    %p52 = scmp.ne.s32.totalorder %s38, %s39
    %p53 = scmp.eq.s32.totalorder %s15, 3
    %p54 = por %p52, %p53
    %p56 = scmp.ne.s32.totalorder %s39, %s55
    %p57 = scmp.eq.s32.totalorder %s15, 0
    %p58 = por %p56, %p57
    %s60 = sadd.s32 %s59, 1
    %p63 = scmp.eq.s32.totalorder %s9, 3
    %p64 = scmp.ne.s32.totalorder %s59, %s61
    %p65 = scmp.eq.s32.totalorder %s9, 0
    %p66 = por %p64, %p65
    %p67 = scmp.ne.s32.totalorder %s59, %s61
    %p68 = scmp.eq.s32.totalorder %s14, 3
    %p69 = por %p67, %p68
    %p70 = scmp.ne.s32.totalorder %s61, %s62
    %p71 = scmp.eq.s32.totalorder %s14, 0
    %p72 = por %p70, %p71
    %p73 = scmp.ne.s32.totalorder %s61, %s62
    %p74 = scmp.eq.s32.totalorder %s15, 3
    %p75 = por %p73, %p74
    %p77 = scmp.ne.s32.totalorder %s62, %s76
    %p78 = scmp.eq.s32.totalorder %s15, 0
    %p79 = por %p77, %p78
    %s81 = sadd.s32 %s80, 1
    %p84 = scmp.eq.s32.totalorder %s9, 3
    %p85 = scmp.ne.s32.totalorder %s80, %s82
    %p86 = scmp.eq.s32.totalorder %s9, 0
    %p87 = por %p85, %p86
    %p88 = scmp.ne.s32.totalorder %s80, %s82
    %p89 = scmp.eq.s32.totalorder %s14, 3
    %p90 = por %p88, %p89
    %p91 = scmp.ne.s32.totalorder %s82, %s83
    %p92 = scmp.eq.s32.totalorder %s14, 0
    %p93 = por %p91, %p92
    %p94 = scmp.ne.s32.totalorder %s82, %s83
    %p95 = scmp.eq.s32.totalorder %s15, 3
    %p96 = por %p94, %p95
    %p98 = scmp.ne.s32.totalorder %s83, %s97
    %p99 = scmp.eq.s32.totalorder %s15, 0
    %p100 = por %p98, %p99
    %s101 = ssub.s32 %s16, %s28
    %s102 = ssub.s32 %s17, %s24
    %s103 = sor.u32 %s101, %s102
    %p104 = scmp.eq.s32.totalorder %s103, 0
    %s106 = sadd.s32 %s105, 1
    %s107 = scalar_select %p104, %s105, %s106
    %p110 = pneg %p104
    %p111 = scmp.eq.s32.totalorder %s9, 3
    %p112 = por %p110, %p111
    %p113 = scmp.ne.s32.totalorder %s105, %s108
    %p114 = scmp.eq.s32.totalorder %s9, 0
    %p115 = por %p113, %p114
    %p116 = scmp.ne.s32.totalorder %s105, %s108
    %p117 = scmp.eq.s32.totalorder %s14, 3
    %p118 = por %p116, %p117
    %p119 = scmp.ne.s32.totalorder %s108, %s109
    %p120 = scmp.eq.s32.totalorder %s14, 0
    %p121 = por %p119, %p120
    %p122 = scmp.ne.s32.totalorder %s108, %s109
    %p123 = scmp.eq.s32.totalorder %s15, 3
    %p124 = por %p122, %p123
    %p126 = scmp.ne.s32.totalorder %s109, %s125
    %p127 = scmp.eq.s32.totalorder %s15, 0
    %p128 = por %p126, %p127
    %p129 = scmp.le.s32.totalorder 1, %s9
    %p130 = scmp.lt.s32.totalorder %s9, 5
    %p131 = pnand %p129, %p130
    %p132 = pneg %p131
    // Predicated region
    $region9: #{pre_backbone_forward.3} parent=5 // pred_check
      _
    $region10: #{pre_backbone_forward.3} parent=5 // pred_check_branch
      %134 = sbr.rel (%p131) target = $region12
    $region11: #{pre_backbone_forward.3} parent=5 // pred_region
      %s135 = ssub.s32 %s9, 1
      // Predicated region
      $region13: #{pre_backbone_forward.3} parent=11 // pred_check
        %p136 = pneg %p72
      $region14: #{pre_backbone_forward.3} parent=11 // pred_check_branch
        %138 = sbr.rel (%p136) target = $region16
      $region15: #{pre_backbone_forward.3} parent=11 // pred_region
        _
      $region16: #{pre_backbone_forward.3} parent=11 // pred_fallthru
        _
      // Predicated region
      $region17: #{pre_backbone_forward.3} parent=11 // pred_check
        %p139 = pneg %p93
      $region18: #{pre_backbone_forward.3} parent=11 // pred_check_branch
        %141 = sbr.rel (%p139) target = $region20
      $region19: #{pre_backbone_forward.3} parent=11 // pred_region
        _
      $region20: #{pre_backbone_forward.3} parent=11 // pred_fallthru
        _
    $region12: #{pre_backbone_forward.3} parent=5 // pred_fallthru
      _
    %p142 = scmp.lt.s32.totalorder %s9, 4
    // Predicated region
    $region21: #{pre_backbone_forward.3} parent=5 // pred_check
      %p143 = pneg %p142
    $region22: #{pre_backbone_forward.3} parent=5 // pred_check_branch
      %145 = sbr.rel (%p143) target = $region24
    $region23: #{pre_backbone_forward.3} parent=5 // pred_region
      // Predicated region
      $region25: #{pre_backbone_forward.3} parent=23 // pred_check
        %p146 = pneg %p45
      $region26: #{pre_backbone_forward.3} parent=23 // pred_check_branch
        %148 = sbr.rel (%p146) target = $region28
      $region27: #{pre_backbone_forward.3} parent=23 // pred_region
        %s149 = smul.u32 %s16, 2
        %s150 = sadd.s32 %s149, %s17
        %p151 = scmp.lt.s32.totalorder %s150, 3
        %s152 = scalar_select %p151, %s150, 3
        %s153 = smul.addr %s152, 4
        %s154 = scalar_lea.vmem %s0, %s153
        %s155 = smul.u32 %s16, 2
        %s156 = sadd.s32 %s155, %s17
      $region28: #{pre_backbone_forward.3} parent=23 // pred_fallthru
        _
    $region24: #{pre_backbone_forward.3} parent=5 // pred_fallthru
      _
    %p157 = scmp.le.s32.totalorder 1, %s9
    %p158 = scmp.lt.s32.totalorder %s9, 5
    %p159 = pnand %p157, %p158
    %p160 = pneg %p159
    // Predicated region
    $region29: #{pre_backbone_forward.3} parent=5 // pred_check
      _
    $region30: #{pre_backbone_forward.3} parent=5 // pred_check_branch
      %162 = sbr.rel (%p159) target = $region32
    $region31: #{pre_backbone_forward.3} parent=5 // pred_region
      %s163 = ssub.s32 %s9, 1
      %s164 = smul.u32 %s18, 2
      %s165 = sadd.s32 %s164, %s19
      %p166 = scmp.lt.s32.totalorder %s165, 3
      %s167 = scalar_select %p166, %s165, 3
      %s168 = smul.addr %s167, 4
      %s169 = scalar_lea.vmem %s0, %s168
      %p170 = pneg %p51
      %p171 = pneg %p48
      %p172 = pneg %p72
      %p173 = pneg %p69
      %p174 = pneg %p93
      %p175 = pneg %p90
      %p176 = pneg %p121
      %p177 = pneg %p118
      %p178 = scmp.lt.s32.totalorder %s18, 1
      %s179 = scalar_select %p178, %s18, 1
      %p180 = scmp.lt.s32.totalorder %s19, 1
      %s181 = scalar_select %p180, %s19, 1
      %s182 = smul.addr %s179, 2
      %s183 = sadd.s32 %s181, %s182
      %s184 = smul.addr %s183, 8
      %s185 = scalar_lea.vmem %s3, %s184
      %s186 = smul.u32 %s18, 2
      %s187 = sadd.s32 %s186, %s19
      %p188 = scmp.lt.s32.totalorder %s187, 3
      %s189 = scalar_select %p188, %s187, 3
      %s190 = smul.addr %s189, 4
      %s191 = scalar_lea.vmem %s0, %s190
      %s192 = smul.u32 %s18, 2
      %s193 = sadd.s32 %s192, %s19
      %p194 = scmp.lt.s32.totalorder %s18, 1
      %s195 = scalar_select %p194, %s18, 1
      %p196 = scmp.lt.s32.totalorder %s19, 1
      %s197 = scalar_select %p196, %s19, 1
      %s198 = smul.addr %s195, 2
      %s199 = sadd.s32 %s197, %s198
      %s200 = smul.addr %s199, 8
      %s201 = scalar_lea.vmem %s3, %s200
      %v202 = vld [vmem:[%s191] sm:$0xf]
      %v203 = vunpack.c.l.bf16 %v202
      %v204 = vld [vmem:[%s1] sm:$0xff]
      %206 = vset.pattern.permute.xlu0 0
      %207 = vperm.xlu0 %206, %v204
      %v208 = vpop.permute.xlu0 %207
      %v210 = vmul.f32 %v203, %v208
      %v211 = vld [vmem:[%s2] sm:$0xff]
      %213 = vset.pattern.permute.xlu0 0
      %214 = vperm.xlu0 %213, %v211
      %v215 = vpop.permute.xlu0 %214
      %v217 = vadd.f32 %v210, %v215
      %v218 = vmax.f32 %v217, 0.0
      %219 = vst [vmem:[%s201] sm:$0xff] %v218
      %p220 = scmp.lt.s32.totalorder %s18, 1
      %s221 = scalar_select %p220, %s18, 1
      %p222 = scmp.lt.s32.totalorder %s19, 1
      %s223 = scalar_select %p222, %s19, 1
      %s224 = smul.addr %s221, 2
      %s225 = sadd.s32 %s223, %s224
      %s226 = smul.addr %s225, 8
      %s227 = scalar_lea.vmem %s3, %s226
      // Predicated region
      $region33: #{pre_backbone_forward.3} parent=31 // pred_check
        %p228 = pneg %p118
      $region34: #{pre_backbone_forward.3} parent=31 // pred_check_branch
        %230 = sbr.rel (%p228) target = $region36
      $region35: #{pre_backbone_forward.3} parent=31 // pred_region
        _
      $region36: #{pre_backbone_forward.3} parent=31 // pred_fallthru
        _
    $region32: #{pre_backbone_forward.3} parent=5 // pred_fallthru
      _
    %p231 = scmp.le.s32.totalorder 2, %s9
    // Predicated region
    $region37: #{pre_backbone_forward.3} parent=5 // pred_check
      %p232 = pneg %p231
    $region38: #{pre_backbone_forward.3} parent=5 // pred_check_branch
      %234 = sbr.rel (%p232) target = $region40
    $region39: #{pre_backbone_forward.3} parent=5 // pred_region
      %s235 = ssub.s32 %s9, 2
      // Predicated region
      $region41: #{pre_backbone_forward.3} parent=39 // pred_check
        %p236 = pneg %p124
      $region42: #{pre_backbone_forward.3} parent=39 // pred_check_branch
        %238 = sbr.rel (%p236) target = $region44
      $region43: #{pre_backbone_forward.3} parent=39 // pred_region
        %p239 = scmp.lt.s32.totalorder %s20, 1
        %s240 = scalar_select %p239, %s20, 1
        %p241 = scmp.lt.s32.totalorder %s21, 1
        %s242 = scalar_select %p241, %s21, 1
        %s243 = smul.addr %s240, 2
        %s244 = sadd.s32 %s242, %s243
        %s245 = smul.addr %s244, 8
        %s246 = scalar_lea.vmem %s3, %s245
      $region44: #{pre_backbone_forward.3} parent=39 // pred_fallthru
        _
    $region40: #{pre_backbone_forward.3} parent=5 // pred_fallthru
      _
  $region6: #{pre_backbone_forward.3} parent=0 // loop_footer
    %s13 = sadd.s32 1, %s9
  $region7: #{pre_backbone_forward.3} parent=0 // loop_footer_branch
    %8 = sbr.rel target = $region3
  $region8: #{pre_backbone_forward.3} parent=0 // loop_exit
    _

// kernel: pre_backbone_forward.2
$region0: #{pre_backbone_forward.2}
  #allocation0 [shape = 'u32[]', space=smem, size = 0x4, offset = 0x4, fixed_abs, tag = 'smem constant byte address 0x4 - core index']
  #allocation1 [shape = 'u32[144,128]{1,0:T(1,128)}', space=vmem, size = 0x12000, scoped, tag = 'internal scratch']
  %s0 = inlined_call_operand.vmem [shape: bf16[208,512], index: 0, kind: input, shape index: {}]
  %s1 = inlined_call_operand.vmem [shape: bf16[8,208], index: 1, kind: input, shape index: {}]
  %s2 = inlined_call_operand.vmem [shape: bf16[8,512], index: 2, kind: output, shape index: {0}]
  %s3 = inlined_call_operand.vmem [shape: f32[2,8,1], index: 3, kind: output, shape index: {1}]
  %s4 = inlined_call_operand.vmem [shape: f32[2,8,1], index: 4, kind: output, shape index: {2}]
  %5 = xla_tuple %s2, %s3, %s4
  %s6 = sld [smem:[#allocation0]]
  $region102: #{pre_backbone_forward.2} parent=0
    _
  %s8 = ssub.s32 1, %s6
  %s9 = scalar_select 0, %s8, %s6
  $region1: #{pre_backbone_forward.2} parent=0
    #allocation2 [shape = 'u8[106496]{0}', space=vmem, size = 0x1a000, scoped, tag = 'input window, operand 0']
    loop: start=0, step=1, limit=6
    $region2: #{pre_backbone_forward.2} parent=1 // loop_pre_header
      _
    $region3: #{pre_backbone_forward.2} parent=1 // loop_header
      %s11 = sphi 0, %s15
      %p12 = scmp.ge.s32.totalorder %s11, 6
      %s18 = sphi 0, %s30
      %s19 = sphi 0, %s26
      %s20 = sphi 0, %s18
      %s21 = sphi 0, %s19
      %s22 = sphi 0, %s20
      %s23 = sphi 0, %s21
      %s37 = sphi 0, %s39
      %s40 = sphi 0, %s37
      %s41 = sphi 0, %s40
      %s57 = sphi 0, %s41
      %s61 = sphi 0, %s61
      %s63 = sphi 0, %s61
      %s64 = sphi 0, %s63
      %s78 = sphi 0, %s64
      %s88 = sphi 0, %s90
      %s91 = sphi 0, %s88
      %s92 = sphi 0, %s91
      %s108 = sphi 0, %s92
      %s114 = sphi 0, %s116
      %s117 = sphi 0, %s114
      %s118 = sphi 0, %s117
      %s134 = sphi 0, %s118
      %s140 = sphi 0, %s142
      %s143 = sphi 0, %s140
      %s144 = sphi 0, %s143
      %s160 = sphi 0, %s144
    $region4: #{pre_backbone_forward.2} parent=1 // loop_header_branch
      %14 = sbr.rel (%p12) target = $region8
    $region5: #{pre_backbone_forward.2} parent=1 // loop_body
      %s16 = ssub.s32 %s11, 1
      %s17 = ssub.s32 %s11, 2
      %s24 = sadd.s32 1, %s19
      %p25 = scmp.ge.s32.totalorder %s24, 2
      %s26 = scalar_select %p25, 0, %s24
      %s27 = sadd.s32 1, %s18
      %s28 = scalar_select %p25, %s27, %s18
      %p29 = scmp.ge.s32.totalorder %s28, 2
      %s30 = scalar_select %p29, 0, %s28
      %s31 = smul.u32 %s18, 2
      %s32 = sadd.s32 %s31, %s19
      %s33 = smul.u32 %s30, 2
      %s34 = sadd.s32 %s33, %s26
      %s35 = ssub.s32 %s32, %s34
      %p36 = scmp.eq.s32.totalorder %s35, 0
      %s38 = sadd.s32 %s37, 1
      %s39 = scalar_select %p36, %s37, %s38
      %p42 = pneg %p36
      %p43 = scmp.eq.s32.totalorder %s11, 3
      %p44 = por %p42, %p43
      %p45 = scmp.ne.s32.totalorder %s37, %s40
      %p46 = scmp.eq.s32.totalorder %s11, 0
      %p47 = por %p45, %p46
      %p48 = scmp.ne.s32.totalorder %s37, %s40
      %p49 = scmp.eq.s32.totalorder %s16, 3
      %p50 = por %p48, %p49
      %p51 = scmp.ne.s32.totalorder %s40, %s41
      %p52 = scmp.eq.s32.totalorder %s16, 0
      %p53 = por %p51, %p52
      %p54 = scmp.ne.s32.totalorder %s40, %s41
      %p55 = scmp.eq.s32.totalorder %s17, 3
      %p56 = por %p54, %p55
      %p58 = scmp.ne.s32.totalorder %s41, %s57
      %p59 = scmp.eq.s32.totalorder %s17, 0
      %p60 = por %p58, %p59
      %s62 = sadd.s32 %s61, 1
      %p65 = scmp.eq.s32.totalorder %s11, 3
      %p66 = scmp.ne.s32.totalorder %s61, %s63
      %p67 = scmp.eq.s32.totalorder %s11, 0
      %p68 = por %p66, %p67
      %p69 = scmp.ne.s32.totalorder %s61, %s63
      %p70 = scmp.eq.s32.totalorder %s16, 3
      %p71 = por %p69, %p70
      %p72 = scmp.ne.s32.totalorder %s63, %s64
      %p73 = scmp.eq.s32.totalorder %s16, 0
      %p74 = por %p72, %p73
      %p75 = scmp.ne.s32.totalorder %s63, %s64
      %p76 = scmp.eq.s32.totalorder %s17, 3
      %p77 = por %p75, %p76
      %p79 = scmp.ne.s32.totalorder %s64, %s78
      %p80 = scmp.eq.s32.totalorder %s17, 0
      %p81 = por %p79, %p80
      %s82 = smul.u32 %s18, 2
      %s83 = sadd.s32 %s82, %s19
      %s84 = smul.u32 %s30, 2
      %s85 = sadd.s32 %s84, %s26
      %s86 = ssub.s32 %s83, %s85
      %p87 = scmp.eq.s32.totalorder %s86, 0
      %s89 = sadd.s32 %s88, 1
      %s90 = scalar_select %p87, %s88, %s89
      %p93 = pneg %p87
      %p94 = scmp.eq.s32.totalorder %s11, 3
      %p95 = por %p93, %p94
      %p96 = scmp.ne.s32.totalorder %s88, %s91
      %p97 = scmp.eq.s32.totalorder %s11, 0
      %p98 = por %p96, %p97
      %p99 = scmp.ne.s32.totalorder %s88, %s91
      %p100 = scmp.eq.s32.totalorder %s16, 3
      %p101 = por %p99, %p100
      %p102 = scmp.ne.s32.totalorder %s91, %s92
      %p103 = scmp.eq.s32.totalorder %s16, 0
      %p104 = por %p102, %p103
      %p105 = scmp.ne.s32.totalorder %s91, %s92
      %p106 = scmp.eq.s32.totalorder %s17, 3
      %p107 = por %p105, %p106
      %p109 = scmp.ne.s32.totalorder %s92, %s108
      %p110 = scmp.eq.s32.totalorder %s17, 0
      %p111 = por %p109, %p110
      %s112 = ssub.s32 %s18, %s30
      %p113 = scmp.eq.s32.totalorder %s112, 0
      %s115 = sadd.s32 %s114, 1
      %s116 = scalar_select %p113, %s114, %s115
      %p119 = pneg %p113
      %p120 = scmp.eq.s32.totalorder %s11, 3
      %p121 = por %p119, %p120
      %p122 = scmp.ne.s32.totalorder %s114, %s117
      %p123 = scmp.eq.s32.totalorder %s11, 0
      %p124 = por %p122, %p123
      %p125 = scmp.ne.s32.totalorder %s114, %s117
      %p126 = scmp.eq.s32.totalorder %s16, 3
      %p127 = por %p125, %p126
      %p128 = scmp.ne.s32.totalorder %s117, %s118
      %p129 = scmp.eq.s32.totalorder %s16, 0
      %p130 = por %p128, %p129
      %p131 = scmp.ne.s32.totalorder %s117, %s118
      %p132 = scmp.eq.s32.totalorder %s17, 3
      %p133 = por %p131, %p132
      %p135 = scmp.ne.s32.totalorder %s118, %s134
      %p136 = scmp.eq.s32.totalorder %s17, 0
      %p137 = por %p135, %p136
      %s138 = ssub.s32 %s18, %s30
      %p139 = scmp.eq.s32.totalorder %s138, 0
      %s141 = sadd.s32 %s140, 1
      %s142 = scalar_select %p139, %s140, %s141
      %p145 = pneg %p139
      %p146 = scmp.eq.s32.totalorder %s11, 3
      %p147 = por %p145, %p146
      %p148 = scmp.ne.s32.totalorder %s140, %s143
      %p149 = scmp.eq.s32.totalorder %s11, 0
      %p150 = por %p148, %p149
      %p151 = scmp.ne.s32.totalorder %s140, %s143
      %p152 = scmp.eq.s32.totalorder %s16, 3
      %p153 = por %p151, %p152
      %p154 = scmp.ne.s32.totalorder %s143, %s144
      %p155 = scmp.eq.s32.totalorder %s16, 0
      %p156 = por %p154, %p155
      %p157 = scmp.ne.s32.totalorder %s143, %s144
      %p158 = scmp.eq.s32.totalorder %s17, 3
      %p159 = por %p157, %p158
      %p161 = scmp.ne.s32.totalorder %s144, %s160
      %p162 = scmp.eq.s32.totalorder %s17, 0
      %p163 = por %p161, %p162
      %p164 = scmp.le.s32.totalorder 1, %s11
      %p165 = scmp.lt.s32.totalorder %s11, 5
      %p166 = pnand %p164, %p165
      %p167 = pneg %p166
      // Predicated region
      $region9: #{pre_backbone_forward.2} parent=5 // pred_check
        _
      $region10: #{pre_backbone_forward.2} parent=5 // pred_check_branch
        %169 = sbr.rel (%p166) target = $region12
      $region11: #{pre_backbone_forward.2} parent=5 // pred_region
        %s170 = ssub.s32 %s11, 1
        // Predicated region
        $region13: #{pre_backbone_forward.2} parent=11 // pred_check
          %p171 = pneg %p74
        $region14: #{pre_backbone_forward.2} parent=11 // pred_check_branch
          %173 = sbr.rel (%p171) target = $region16
        $region15: #{pre_backbone_forward.2} parent=11 // pred_region
          _
        $region16: #{pre_backbone_forward.2} parent=11 // pred_fallthru
          _
      $region12: #{pre_backbone_forward.2} parent=5 // pred_fallthru
        _
      %p174 = scmp.lt.s32.totalorder %s11, 4
      // Predicated region
      $region17: #{pre_backbone_forward.2} parent=5 // pred_check
        %p175 = pneg %p174
      $region18: #{pre_backbone_forward.2} parent=5 // pred_check_branch
        %177 = sbr.rel (%p175) target = $region20
      $region19: #{pre_backbone_forward.2} parent=5 // pred_region
        // Predicated region
        $region21: #{pre_backbone_forward.2} parent=19 // pred_check
          %p178 = pneg %p47
        $region22: #{pre_backbone_forward.2} parent=19 // pred_check_branch
          %180 = sbr.rel (%p178) target = $region24
        $region23: #{pre_backbone_forward.2} parent=19 // pred_region
          %s181 = sand.u32 %s37, 1
          %s182 = sand.u32 %s37, 1
          %s183 = smul.addr %s182, 104
          %s184 = scalar_lea.vmem [#allocation2], %s183
          %s185 = smul.u32 %s18, 2
          %s186 = sadd.s32 %s185, %s19
          %s187 = smul.addr %s186, 4
          %s188 = scalar_lea.vmem %s0, %s187
          // Predicated region
          $region25: #{pre_backbone_forward.2} parent=23 // pred_check
            _
          $region26: #{pre_backbone_forward.2} parent=23 // pred_check_branch
            %190 = sbr.rel (0) target = $region28
          $region27: #{pre_backbone_forward.2} parent=23 // pred_region
            // Predicated region
            $region29: #{pre_backbone_forward.2} parent=27 // pred_check
              _
            $region30: #{pre_backbone_forward.2} parent=27 // pred_check_branch
              %192 = sbr.rel target = $region32
            $region31: #{pre_backbone_forward.2} parent=27 // pred_region
              // Predicated region
              $region44: #{pre_backbone_forward.2} parent=31 // pred_check
                _
              $region45: #{pre_backbone_forward.2} parent=31 // pred_check_branch
                %257 = sbr.rel (0) target = $region47
              $region46: #{pre_backbone_forward.2} parent=31 // pred_region
                loop: start=0, step=1, limit=1
                $region48: #{pre_backbone_forward.2} parent=46 // loop_pre_header
                  _
                $region49: #{pre_backbone_forward.2} parent=46 // loop_header
                  %s259 = sphi 0, %s263
                  %p260 = scmp.ge.s32.totalorder %s259, 1
                  %s264 = sphi %s188, %s188
                  %s265 = sphi %s184, %s184
                $region50: #{pre_backbone_forward.2} parent=46 // loop_header_branch
                  %262 = sbr.rel (%p260) target = $region54
                $region51: #{pre_backbone_forward.2} parent=46 // loop_body
                  _
                $region52: #{pre_backbone_forward.2} parent=46 // loop_footer
                  %s263 = sadd.s32 1, %s259
                $region53: #{pre_backbone_forward.2} parent=46 // loop_footer_branch
                  %258 = sbr.rel target = $region49
                $region54: #{pre_backbone_forward.2} parent=46 // loop_exit
                  _
                loop: start=0, step=1, limit=1
                $region55: #{pre_backbone_forward.2} parent=46 // loop_pre_header
                  _
                $region56: #{pre_backbone_forward.2} parent=46 // loop_header
                  %s268 = sphi 0, %s272
                  %p269 = scmp.ge.s32.totalorder %s268, 1
                  %s273 = sphi %s188, %s188
                  %s274 = sphi %s184, %s184
                $region57: #{pre_backbone_forward.2} parent=46 // loop_header_branch
                  %271 = sbr.rel (%p269) target = $region61
                $region58: #{pre_backbone_forward.2} parent=46 // loop_body
                  %v275 = vld [vmem:[%s273] sm:$0xf]
                  %276 = vst [vmem:[%s274] sm:$0xf] %v275
                  %v277 = vld [vmem:[%s273 + $0x10] sm:$0xf]
                  %278 = vst [vmem:[%s274 + $0x4] sm:$0xf] %v277
                  %v279 = vld [vmem:[%s273 + $0x20] sm:$0xf]
                  %280 = vst [vmem:[%s274 + $0x8] sm:$0xf] %v279
                  %v281 = vld [vmem:[%s273 + $0x30] sm:$0xf]
                  %282 = vst [vmem:[%s274 + $0xc] sm:$0xf] %v281
                  %v283 = vld [vmem:[%s273 + $0x40] sm:$0xf]
                  %284 = vst [vmem:[%s274 + $0x10] sm:$0xf] %v283
                  %v285 = vld [vmem:[%s273 + $0x50] sm:$0xf]
                  %286 = vst [vmem:[%s274 + $0x14] sm:$0xf] %v285
                  %v287 = vld [vmem:[%s273 + $0x60] sm:$0xf]
                  %288 = vst [vmem:[%s274 + $0x18] sm:$0xf] %v287
                  %v289 = vld [vmem:[%s273 + $0x70] sm:$0xf]
                  %290 = vst [vmem:[%s274 + $0x1c] sm:$0xf] %v289
                  %v291 = vld [vmem:[%s273 + $0x80] sm:$0xf]
                  %292 = vst [vmem:[%s274 + $0x20] sm:$0xf] %v291
                  %v293 = vld [vmem:[%s273 + $0x90] sm:$0xf]
                  %294 = vst [vmem:[%s274 + $0x24] sm:$0xf] %v293
                  %v295 = vld [vmem:[%s273 + $0xa0] sm:$0xf]
                  %296 = vst [vmem:[%s274 + $0x28] sm:$0xf] %v295
                  %v297 = vld [vmem:[%s273 + $0xb0] sm:$0xf]
                  %298 = vst [vmem:[%s274 + $0x2c] sm:$0xf] %v297
                  %v299 = vld [vmem:[%s273 + $0xc0] sm:$0xf]
                  %300 = vst [vmem:[%s274 + $0x30] sm:$0xf] %v299
                  %v301 = vld [vmem:[%s273 + $0xd0] sm:$0xf]
                  %302 = vst [vmem:[%s274 + $0x34] sm:$0xf] %v301
                  %v303 = vld [vmem:[%s273 + $0xe0] sm:$0xf]
                  %304 = vst [vmem:[%s274 + $0x38] sm:$0xf] %v303
                  %v305 = vld [vmem:[%s273 + $0xf0] sm:$0xf]
                  %306 = vst [vmem:[%s274 + $0x3c] sm:$0xf] %v305
                  %v307 = vld [vmem:[%s273 + $0x100] sm:$0xf]
                  %308 = vst [vmem:[%s274 + $0x40] sm:$0xf] %v307
                  %v309 = vld [vmem:[%s273 + $0x110] sm:$0xf]
                  %310 = vst [vmem:[%s274 + $0x44] sm:$0xf] %v309
                  %v311 = vld [vmem:[%s273 + $0x120] sm:$0xf]
                  %312 = vst [vmem:[%s274 + $0x48] sm:$0xf] %v311
                  %v313 = vld [vmem:[%s273 + $0x130] sm:$0xf]
                  %314 = vst [vmem:[%s274 + $0x4c] sm:$0xf] %v313
                  %v315 = vld [vmem:[%s273 + $0x140] sm:$0xf]
                  %316 = vst [vmem:[%s274 + $0x50] sm:$0xf] %v315
                  %v317 = vld [vmem:[%s273 + $0x150] sm:$0xf]
                  %318 = vst [vmem:[%s274 + $0x54] sm:$0xf] %v317
                  %v319 = vld [vmem:[%s273 + $0x160] sm:$0xf]
                  %320 = vst [vmem:[%s274 + $0x58] sm:$0xf] %v319
                  %v321 = vld [vmem:[%s273 + $0x170] sm:$0xf]
                  %322 = vst [vmem:[%s274 + $0x5c] sm:$0xf] %v321
                  %v323 = vld [vmem:[%s273 + $0x180] sm:$0xf]
                  %324 = vst [vmem:[%s274 + $0x60] sm:$0xf] %v323
                  %v325 = vld [vmem:[%s273 + $0x190] sm:$0xf]
                  %326 = vst [vmem:[%s274 + $0x64] sm:$0xf] %v325
                $region59: #{pre_backbone_forward.2} parent=46 // loop_footer
                  %s272 = sadd.s32 1, %s268
                $region60: #{pre_backbone_forward.2} parent=46 // loop_footer_branch
                  %267 = sbr.rel target = $region56
                $region61: #{pre_backbone_forward.2} parent=46 // loop_exit
                  _
              $region47: #{pre_backbone_forward.2} parent=31 // pred_fallthru
                _
            $region32: #{pre_backbone_forward.2} parent=27 // pred_fallthru
              _
            // Predicated region
            $region33: #{pre_backbone_forward.2} parent=27 // pred_check
              _
            $region34: #{pre_backbone_forward.2} parent=27 // pred_check_branch
              %194 = sbr.rel (0) target = $region36
            $region35: #{pre_backbone_forward.2} parent=27 // pred_region
              loop: start=0, step=1, limit=1
              $region37: #{pre_backbone_forward.2} parent=35 // loop_pre_header
                _
              $region38: #{pre_backbone_forward.2} parent=35 // loop_header
                %s197 = sphi 0, %s201
                %p198 = scmp.ge.s32.totalorder %s197, 1
                %s202 = sphi %s188, %s188
                %s203 = sphi %s184, %s184
              $region39: #{pre_backbone_forward.2} parent=35 // loop_header_branch
                %200 = sbr.rel (%p198) target = $region43
              $region40: #{pre_backbone_forward.2} parent=35 // loop_body
                %v204 = vld [vmem:[%s202] sm:$0xf]
                %205 = vst [vmem:[%s203] sm:$0xf] %v204
                %v206 = vld [vmem:[%s202 + $0x10] sm:$0xf]
                %207 = vst [vmem:[%s203 + $0x4] sm:$0xf] %v206
                %v208 = vld [vmem:[%s202 + $0x20] sm:$0xf]
                %209 = vst [vmem:[%s203 + $0x8] sm:$0xf] %v208
                %v210 = vld [vmem:[%s202 + $0x30] sm:$0xf]
                %211 = vst [vmem:[%s203 + $0xc] sm:$0xf] %v210
                %v212 = vld [vmem:[%s202 + $0x40] sm:$0xf]
                %213 = vst [vmem:[%s203 + $0x10] sm:$0xf] %v212
                %v214 = vld [vmem:[%s202 + $0x50] sm:$0xf]
                %215 = vst [vmem:[%s203 + $0x14] sm:$0xf] %v214
                %v216 = vld [vmem:[%s202 + $0x60] sm:$0xf]
                %217 = vst [vmem:[%s203 + $0x18] sm:$0xf] %v216
                %v218 = vld [vmem:[%s202 + $0x70] sm:$0xf]
                %219 = vst [vmem:[%s203 + $0x1c] sm:$0xf] %v218
                %v220 = vld [vmem:[%s202 + $0x80] sm:$0xf]
                %221 = vst [vmem:[%s203 + $0x20] sm:$0xf] %v220
                %v222 = vld [vmem:[%s202 + $0x90] sm:$0xf]
                %223 = vst [vmem:[%s203 + $0x24] sm:$0xf] %v222
                %v224 = vld [vmem:[%s202 + $0xa0] sm:$0xf]
                %225 = vst [vmem:[%s203 + $0x28] sm:$0xf] %v224
                %v226 = vld [vmem:[%s202 + $0xb0] sm:$0xf]
                %227 = vst [vmem:[%s203 + $0x2c] sm:$0xf] %v226
                %v228 = vld [vmem:[%s202 + $0xc0] sm:$0xf]
                %229 = vst [vmem:[%s203 + $0x30] sm:$0xf] %v228
                %v230 = vld [vmem:[%s202 + $0xd0] sm:$0xf]
                %231 = vst [vmem:[%s203 + $0x34] sm:$0xf] %v230
                %v232 = vld [vmem:[%s202 + $0xe0] sm:$0xf]
                %233 = vst [vmem:[%s203 + $0x38] sm:$0xf] %v232
                %v234 = vld [vmem:[%s202 + $0xf0] sm:$0xf]
                %235 = vst [vmem:[%s203 + $0x3c] sm:$0xf] %v234
                %v236 = vld [vmem:[%s202 + $0x100] sm:$0xf]
                %237 = vst [vmem:[%s203 + $0x40] sm:$0xf] %v236
                %v238 = vld [vmem:[%s202 + $0x110] sm:$0xf]
                %239 = vst [vmem:[%s203 + $0x44] sm:$0xf] %v238
                %v240 = vld [vmem:[%s202 + $0x120] sm:$0xf]
                %241 = vst [vmem:[%s203 + $0x48] sm:$0xf] %v240
                %v242 = vld [vmem:[%s202 + $0x130] sm:$0xf]
                %243 = vst [vmem:[%s203 + $0x4c] sm:$0xf] %v242
                %v244 = vld [vmem:[%s202 + $0x140] sm:$0xf]
                %245 = vst [vmem:[%s203 + $0x50] sm:$0xf] %v244
                %v246 = vld [vmem:[%s202 + $0x150] sm:$0xf]
                %247 = vst [vmem:[%s203 + $0x54] sm:$0xf] %v246
                %v248 = vld [vmem:[%s202 + $0x160] sm:$0xf]
                %249 = vst [vmem:[%s203 + $0x58] sm:$0xf] %v248
                %v250 = vld [vmem:[%s202 + $0x170] sm:$0xf]
                %251 = vst [vmem:[%s203 + $0x5c] sm:$0xf] %v250
                %v252 = vld [vmem:[%s202 + $0x180] sm:$0xf]
                %253 = vst [vmem:[%s203 + $0x60] sm:$0xf] %v252
                %v254 = vld [vmem:[%s202 + $0x190] sm:$0xf]
                %255 = vst [vmem:[%s203 + $0x64] sm:$0xf] %v254
              $region41: #{pre_backbone_forward.2} parent=35 // loop_footer
                %s201 = sadd.s32 1, %s197
              $region42: #{pre_backbone_forward.2} parent=35 // loop_footer_branch
                %196 = sbr.rel target = $region38
              $region43: #{pre_backbone_forward.2} parent=35 // loop_exit
                _
            $region36: #{pre_backbone_forward.2} parent=27 // pred_fallthru
              _
          $region28: #{pre_backbone_forward.2} parent=23 // pred_fallthru
            _
          %327 = vnop
        $region24: #{pre_backbone_forward.2} parent=19 // pred_fallthru
          _
      $region20: #{pre_backbone_forward.2} parent=5 // pred_fallthru
        _
      %p328 = scmp.le.s32.totalorder 1, %s11
      %p329 = scmp.lt.s32.totalorder %s11, 5
      %p330 = pnand %p328, %p329
      %p331 = pneg %p330
      // Predicated region
      $region62: #{pre_backbone_forward.2} parent=5 // pred_check
        _
      $region63: #{pre_backbone_forward.2} parent=5 // pred_check_branch
        %333 = sbr.rel (%p330) target = $region65
      $region64: #{pre_backbone_forward.2} parent=5 // pred_region
        %s334 = ssub.s32 %s11, 1
        %s335 = sand.u32 %s40, 1
        %s336 = sand.u32 %s40, 1
        %s337 = smul.addr %s336, 104
        %s338 = scalar_lea.vmem [#allocation2], %s337
        // Predicated region
        $region66: #{pre_backbone_forward.2} parent=64 // pred_check
          %p339 = pneg %p53
        $region67: #{pre_backbone_forward.2} parent=64 // pred_check_branch
          %341 = sbr.rel (%p339) target = $region69
        $region68: #{pre_backbone_forward.2} parent=64 // pred_region
          _
        $region69: #{pre_backbone_forward.2} parent=64 // pred_fallthru
          _
        %s342 = sand.u32 %s40, 1
        %s343 = sand.u32 %s40, 1
        %s344 = smul.addr %s343, 104
        %s345 = scalar_lea.vmem [#allocation2], %s344
        %p346 = pneg %p53
        %p347 = pneg %p50
        %p348 = pneg %p74
        %p349 = pneg %p71
        %p350 = pneg %p104
        %p351 = pneg %p101
        %s352 = smul.u32 %s20, 2
        %s353 = sadd.s32 %s352, %s21
        %p354 = scmp.lt.s32.totalorder %s353, 3
        %s355 = scalar_select %p354, %s353, 3
        %s356 = smul.addr %s355, 4
        %s357 = scalar_lea.vmem %s2, %s356
        %p358 = pneg %p130
        %p359 = pneg %p127
        %p360 = scmp.lt.s32.totalorder %s20, 1
        %s361 = scalar_select %p360, %s20, 1
        %s362 = smul.addr %s361, 8
        %s363 = scalar_lea.vmem %s3, %s362
        %p364 = pneg %p156
        %p365 = pneg %p153
        %p366 = scmp.lt.s32.totalorder %s20, 1
        %s367 = scalar_select %p366, %s20, 1
        %s368 = smul.addr %s367, 8
        %s369 = scalar_lea.vmem %s4, %s368
        %s370 = smul.u32 %s20, 2
        %s371 = sadd.s32 %s370, %s21
        %s372 = smul.u32 %s20, 2
        %s373 = sadd.s32 %s372, %s21
        %p374 = scmp.lt.s32.totalorder %s373, 3
        %s375 = scalar_select %p374, %s373, 3
        %s376 = smul.addr %s375, 4
        %s377 = scalar_lea.vmem %s2, %s376
        %s378 = smul.u32 %s20, 2
        %s379 = sadd.s32 %s378, %s21
        %p380 = scmp.lt.s32.totalorder %s20, 1
        %s381 = scalar_select %p380, %s20, 1
        %s382 = smul.addr %s381, 8
        %s383 = scalar_lea.vmem %s3, %s382
        %p384 = scmp.lt.s32.totalorder %s20, 1
        %s385 = scalar_select %p384, %s20, 1
        %s386 = smul.addr %s385, 8
        %s387 = scalar_lea.vmem %s4, %s386
        %p389 = scmp.eq.s32.totalorder %s21, 0
        // Predicated region
        $region70: #{pre_backbone_forward.2} parent=64 // pred_check
          %p390 = pneg %p389
        $region71: #{pre_backbone_forward.2} parent=64 // pred_check_branch
          %392 = sbr.rel (%p390) target = $region73
        $region72: #{pre_backbone_forward.2} parent=64 // pred_region
          %vm393 = vcmask 7168
          %394 = vst.msk [vmem:[%s383] sm:$0xff] %vm393, 0.0
          %395 = vst.msk [vmem:[%s387] sm:$0xff] %vm393, 0.0
        $region73: #{pre_backbone_forward.2} parent=64 // pred_fallthru
          _
        %v396 = vld [vmem:[%s1] sm:$0xff]
        %v397 = vld [vmem:[%s338] sm:$0xf]
        %v398 = vld [vmem:[%s338 + $0x4] sm:$0xf]
        %v399 = vld [vmem:[%s338 + $0x8] sm:$0xf]
        %v400 = vld [vmem:[%s338 + $0xc] sm:$0xf]
        %v401 = vld [vmem:[%s338 + $0x10] sm:$0xf]
        %v402 = vld [vmem:[%s338 + $0x14] sm:$0xf]
        %v403 = vld [vmem:[%s338 + $0x18] sm:$0xf]
        %v404 = vld [vmem:[%s338 + $0x1c] sm:$0xf]
        %v405 = vld [vmem:[%s338 + $0x20] sm:$0xf]
        %v406 = vld [vmem:[%s338 + $0x24] sm:$0xf]
        %v407 = vld [vmem:[%s338 + $0x28] sm:$0xf]
        %v408 = vld [vmem:[%s338 + $0x2c] sm:$0xf]
        %v409 = vld [vmem:[%s338 + $0x30] sm:$0xf]
        %v410 = vld [vmem:[%s338 + $0x34] sm:$0xf]
        %v411 = vld [vmem:[%s338 + $0x38] sm:$0xf]
        %v412 = vld [vmem:[%s338 + $0x3c] sm:$0xf]
        %v413 = vld [vmem:[%s338 + $0x40] sm:$0xf]
        %v414 = vld [vmem:[%s338 + $0x44] sm:$0xf]
        %v415 = vld [vmem:[%s338 + $0x48] sm:$0xf]
        %v416 = vld [vmem:[%s338 + $0x4c] sm:$0xf]
        %v417 = vld [vmem:[%s338 + $0x50] sm:$0xf]
        %v418 = vld [vmem:[%s338 + $0x54] sm:$0xf]
        %v419 = vld [vmem:[%s338 + $0x58] sm:$0xf]
        %v420 = vld [vmem:[%s338 + $0x5c] sm:$0xf]
        %v421 = vld [vmem:[%s338 + $0x60] sm:$0xf]
        %v422 = vld [vmem:[%s338 + $0x64] sm:$0xf]
        %v424 = vunpack.c.l.b16 %v396
        %v425 = vunpack.c.h.b16 %v396
        %v426 = vpack.c.b16 %v424, %v424
        %v427 = vpack.c.b16 %v425, %v425
        %v455 = vunpack.c.l.b16 %v397
        %v456 = vunpack.c.l.b16 %v398
        %v457 = vunpack.c.l.b16 %v399
        %v458 = vunpack.c.l.b16 %v400
        %v459 = vunpack.c.l.b16 %v401
        %v460 = vunpack.c.l.b16 %v402
        %v461 = vunpack.c.l.b16 %v403
        %v462 = vunpack.c.l.b16 %v404
        %v463 = vunpack.c.l.b16 %v405
        %v464 = vunpack.c.l.b16 %v406
        %v465 = vunpack.c.l.b16 %v407
        %v466 = vunpack.c.l.b16 %v408
        %v467 = vunpack.c.l.b16 %v409
        %v468 = vunpack.c.l.b16 %v410
        %v469 = vunpack.c.l.b16 %v411
        %v470 = vunpack.c.l.b16 %v412
        %v471 = vunpack.c.l.b16 %v413
        %v472 = vunpack.c.l.b16 %v414
        %v473 = vunpack.c.l.b16 %v415
        %v474 = vunpack.c.l.b16 %v416
        %v475 = vunpack.c.l.b16 %v417
        %v476 = vunpack.c.l.b16 %v418
        %v477 = vunpack.c.l.b16 %v419
        %v478 = vunpack.c.l.b16 %v420
        %v479 = vunpack.c.l.b16 %v421
        %v480 = vunpack.c.l.b16 %v422
        %v481 = vpack.c.b16 %v456, %v455
        %v482 = vpack.c.b16 %v458, %v457
        %v483 = vpack.c.b16 %v460, %v459
        %v484 = vpack.c.b16 %v462, %v461
        %v485 = vpack.c.b16 %v464, %v463
        %v486 = vpack.c.b16 %v466, %v465
        %v487 = vpack.c.b16 %v468, %v467
        %v488 = vpack.c.b16 %v470, %v469
        %v489 = vpack.c.b16 %v472, %v471
        %v490 = vpack.c.b16 %v474, %v473
        %v491 = vpack.c.b16 %v476, %v475
        %v492 = vpack.c.b16 %v478, %v477
        %v493 = vpack.c.b16 %v480, %v479
        %vm507 = vcmask 654336
        %v509 = vsel %vm507, %v427, 0
        %511 = vmatprep.subr.bf16.mxu0 0
        %512 = vmatpush1.bf16.msra.mxu0 %v481
        %513 = vmatprep.subr.bf16.mxu0 0
        %514 = vmatpush1.bf16.msra.mxu0 %v482
        %515 = vmatprep.subr.bf16.mxu0 0
        %516 = vmatpush1.bf16.msra.mxu0 %v483
        %517 = vmatprep.subr.bf16.mxu0 0
        %518 = vmatpush1.bf16.msra.mxu0 %v484
        %519 = vmatprep.subr.bf16.mxu0 0
        %520 = vmatpush1.bf16.msra.mxu0 %v485
        %521 = vmatprep.subr.bf16.mxu0 0
        %522 = vmatpush1.bf16.msra.mxu0 %v486
        %523 = vmatprep.subr.bf16.mxu0 0
        %524 = vmatpush1.bf16.msra.mxu0 %v487
        %525 = vmatprep.subr.bf16.mxu0 0
        %526 = vmatpush1.bf16.msra.mxu0 %v488
        %527 = vmatprep.subr.bf16.mxu0 0
        %528 = vmatpush1.bf16.msra.mxu0 %v489
        %529 = vmatprep.subr.bf16.mxu0 0
        %530 = vmatpush1.bf16.msra.mxu0 %v490
        %531 = vmatprep.subr.bf16.mxu0 0
        %532 = vmatpush1.bf16.msra.mxu0 %v491
        %533 = vmatprep.subr.bf16.mxu0 0
        %534 = vmatpush1.bf16.msra.mxu0 %v492
        %535 = vmatprep.subr.bf16.mxu0 0
        %536 = vmatpush1.bf16.msra.mxu0 %v493
        %537 = vmatprep.subr.bf16.mxu0 0
        %538 = vmatpush1.bf16.msra.mxu0 0
        %539 = vmatprep.subr.bf16.mxu0 0
        %540 = vmatpush1.bf16.msra.mxu0 0
        %541 = vmatprep.subr.bf16.mxu0 0
        %542 = vmatpush1.bf16.msra.mxu0 0
        %543 = vmatprep.mubr.bf16.mxu0 %v509
        %544 = vmatmul.mubr.bf16.gmra.mrb[0].mxu0 %v426
        %v545 = vpop.f32.mrb[0].mxu0
        %v546 = vadd.f32 0.0, %v545
        %v547 = vpop.f32.mrb[0].mxu0
        %v548 = vpop.f32.mrb[0].mxu0
        %v549 = vpop.f32.mrb[0].mxu0
        %550 = vdwg.mxu0
        %v551 = vpack.c.bf16 %v546, %v546
        %552 = vst [vmem:[%s377] sm:$0xf] %v551
        %v553 = vld [vmem:[%s383] sm:$0xff]
        %554 = vadd.xlane.f32.xlu0 %v546
        %v555 = vpop.xlane.xlu0 %554
        %v556 = vadd.f32 %v553, %v555
        %vm557 = vcmask 7168
        %558 = vst.msk [vmem:[%s383] sm:$0xff] %vm557, %v556
        %v559 = vld [vmem:[%s387] sm:$0xff]
        %v560 = vmul.f32 %v546, %v546
        %561 = vadd.xlane.f32.xlu0 %v560
        %v562 = vpop.xlane.xlu0 %561
        %v563 = vadd.f32 %v559, %v562
        %564 = vst.msk [vmem:[%s387] sm:$0xff] %vm557, %v563
        %s565 = smul.u32 %s20, 2
        %s566 = sadd.s32 %s565, %s21
        %p567 = scmp.lt.s32.totalorder %s566, 3
        %s568 = scalar_select %p567, %s566, 3
        %s569 = smul.addr %s568, 4
        %s570 = scalar_lea.vmem %s2, %s569
        %p571 = scmp.lt.s32.totalorder %s20, 1
        %s572 = scalar_select %p571, %s20, 1
        %s573 = smul.addr %s572, 8
        %s574 = scalar_lea.vmem %s3, %s573
        %p575 = scmp.lt.s32.totalorder %s20, 1
        %s576 = scalar_select %p575, %s20, 1
        %s577 = smul.addr %s576, 8
        %s578 = scalar_lea.vmem %s4, %s577
        // Predicated region
        $region74: #{pre_backbone_forward.2} parent=64 // pred_check
          %p579 = pneg %p101
        $region75: #{pre_backbone_forward.2} parent=64 // pred_check_branch
          %581 = sbr.rel (%p579) target = $region77
        $region76: #{pre_backbone_forward.2} parent=64 // pred_region
          %s582 = smul.u32 %s20, 2
          %s583 = sadd.s32 %s582, %s21
        $region77: #{pre_backbone_forward.2} parent=64 // pred_fallthru
          _
        // Predicated region
        $region78: #{pre_backbone_forward.2} parent=64 // pred_check
          %p584 = pneg %p127
        $region79: #{pre_backbone_forward.2} parent=64 // pred_check_branch
          %586 = sbr.rel (%p584) target = $region81
        $region80: #{pre_backbone_forward.2} parent=64 // pred_region
          _
        $region81: #{pre_backbone_forward.2} parent=64 // pred_fallthru
          _
        // Predicated region
        $region82: #{pre_backbone_forward.2} parent=64 // pred_check
          %p587 = pneg %p153
        $region83: #{pre_backbone_forward.2} parent=64 // pred_check_branch
          %589 = sbr.rel (%p587) target = $region85
        $region84: #{pre_backbone_forward.2} parent=64 // pred_region
          _
        $region85: #{pre_backbone_forward.2} parent=64 // pred_fallthru
          _
      $region65: #{pre_backbone_forward.2} parent=5 // pred_fallthru
        _
      %p590 = scmp.le.s32.totalorder 2, %s11
      // Predicated region
      $region86: #{pre_backbone_forward.2} parent=5 // pred_check
        %p591 = pneg %p590
      $region87: #{pre_backbone_forward.2} parent=5 // pred_check_branch
        %593 = sbr.rel (%p591) target = $region89
      $region88: #{pre_backbone_forward.2} parent=5 // pred_region
        %s594 = ssub.s32 %s11, 2
        // Predicated region
        $region90: #{pre_backbone_forward.2} parent=88 // pred_check
          %p595 = pneg %p107
        $region91: #{pre_backbone_forward.2} parent=88 // pred_check_branch
          %597 = sbr.rel (%p595) target = $region93
        $region92: #{pre_backbone_forward.2} parent=88 // pred_region
          %s598 = smul.u32 %s22, 2
          %s599 = sadd.s32 %s598, %s23
          %p600 = scmp.lt.s32.totalorder %s599, 3
          %s601 = scalar_select %p600, %s599, 3
          %s602 = smul.addr %s601, 4
          %s603 = scalar_lea.vmem %s2, %s602
        $region93: #{pre_backbone_forward.2} parent=88 // pred_fallthru
          _
        // Predicated region
        $region94: #{pre_backbone_forward.2} parent=88 // pred_check
          %p604 = pneg %p133
        $region95: #{pre_backbone_forward.2} parent=88 // pred_check_branch
          %606 = sbr.rel (%p604) target = $region97
        $region96: #{pre_backbone_forward.2} parent=88 // pred_region
          %p607 = scmp.lt.s32.totalorder %s22, 1
          %s608 = scalar_select %p607, %s22, 1
          %s609 = smul.addr %s608, 8
          %s610 = scalar_lea.vmem %s3, %s609
        $region97: #{pre_backbone_forward.2} parent=88 // pred_fallthru
          _
        // Predicated region
        $region98: #{pre_backbone_forward.2} parent=88 // pred_check
          %p611 = pneg %p159
        $region99: #{pre_backbone_forward.2} parent=88 // pred_check_branch
          %613 = sbr.rel (%p611) target = $region101
        $region100: #{pre_backbone_forward.2} parent=88 // pred_region
          %p614 = scmp.lt.s32.totalorder %s22, 1
          %s615 = scalar_select %p614, %s22, 1
          %s616 = smul.addr %s615, 8
          %s617 = scalar_lea.vmem %s4, %s616
        $region101: #{pre_backbone_forward.2} parent=88 // pred_fallthru
          _
      $region89: #{pre_backbone_forward.2} parent=5 // pred_fallthru
        _
    $region6: #{pre_backbone_forward.2} parent=1 // loop_footer
      %s15 = sadd.s32 1, %s11
    $region7: #{pre_backbone_forward.2} parent=1 // loop_footer_branch
      %10 = sbr.rel target = $region3
    $region8: #{pre_backbone_forward.2} parent=1 // loop_exit
      _

</llo_original>
